<compile_context>
chip_gen: v6e
topology: v6e:2x2x1
jax: 0.10.0
libtpu: 0.0.40
codegen_flags: <defaults>
</compile_context>

<pallas_src>
import functools
import math

import jax
import jax.numpy as jnp
from jax import lax
from jax.experimental import pallas as pl
from jax.experimental.pallas import tpu as pltpu


# --------------------------------- kernel ------------------------------------

def _distill_kernel(*refs, distillation_type, alpha, tau, inv_batch, soft_scale):
    if distillation_type == "none":
        student_ref, lab_ref, loss_ref = refs
    else:
        inputs_ref, tw_ref, tb_ref, student_ref, kd_ref, lab_ref, loss_ref = refs

    i = pl.program_id(0)

    @pl.when(i == 0)
    def _():
        loss_ref[...] = jnp.zeros_like(loss_ref)

    student = student_ref[...]            # (TB, C) class-token logits, f32
    labels = lab_ref[...]                 # (TB, 1) int32
    TB, C = student.shape

    class_iota = lax.broadcasted_iota(jnp.int32, (TB, C), 1)
    onehot_lab = (class_iota == labels).astype(jnp.float32)

    # ---- base criterion: CrossEntropyLoss(outputs, labels), reduction='mean' ----
    # CE_sum = sum_rows(logsumexp(student)) - sum(student[label]); avoids forming
    # the full log-softmax matrix.
    m_s = jnp.max(student, axis=-1, keepdims=True)                    # XLU lane reduce
    lse_s = m_s + jnp.log(jnp.sum(jnp.exp(student - m_s), axis=-1, keepdims=True))
    base_sum = jnp.sum(lse_s) - jnp.sum(student * onehot_lab)

    if distillation_type == "none":
        contrib = base_sum * inv_batch
    else:
        contrib = ((1.0 - alpha) * inv_batch) * base_sum
        kd = kd_ref[...]                  # (TB, C) dist-token logits, f32

        # ---- teacher forward (torch.no_grad): bf16 MXU matmul, f32 accumulation ----
        t_logits = jnp.dot(inputs_ref[...].astype(jnp.bfloat16),
                           tw_ref[...].astype(jnp.bfloat16),
                           preferred_element_type=jnp.float32) + tb_ref[...]

        if distillation_type == "soft":
            inv_T = 1.0 / tau
            kd_t = kd * inv_T
            tl_t = t_logits * inv_T
            # student log-softmax
            m_k = jnp.max(kd_t, axis=-1, keepdims=True)
            sk = kd_t - m_k
            log_ps = sk - jnp.log(jnp.sum(jnp.exp(sk), axis=-1, keepdims=True))
            # teacher: log-softmax and softmax sharing a single exp pass (EUP)
            m_t = jnp.max(tl_t, axis=-1, keepdims=True)
            st = tl_t - m_t
            e_t = jnp.exp(st)
            denom = jnp.sum(e_t, axis=-1, keepdims=True)
            log_pt = st - jnp.log(denom)
            p_t = e_t / denom
            kl_sum = jnp.sum(p_t * (log_pt - log_ps))                 # reduction='sum'
            contrib = contrib + soft_scale * kl_sum                   # * T*T/(B*C) * alpha
        else:  # "hard"
            # first-occurrence argmax over classes as a one-hot mask
            t_max = jnp.max(t_logits, axis=-1, keepdims=True)
            fiota = class_iota.astype(jnp.float32)
            first_idx = jnp.min(jnp.where(t_logits == t_max, fiota, float(C)),
                                axis=-1, keepdims=True)
            onehot_t = (fiota == first_idx).astype(jnp.float32)
            m_k = jnp.max(kd, axis=-1, keepdims=True)
            lse_k = m_k + jnp.log(jnp.sum(jnp.exp(kd - m_k), axis=-1, keepdims=True))
            hard_sum = jnp.sum(lse_k) - jnp.sum(kd * onehot_t)
            contrib = contrib + (alpha * inv_batch) * hard_sum

    loss_ref[...] = loss_ref[...] + contrib                            # resident accumulator


# -------------------------------- wrapper ------------------------------------

def _pick_batch_tile(B):
    # Largest (8,128)-legal tile: any multiple of 8 that divides B, or B itself
    # (equal-to-full-dim is always legal). Bigger tiles -> fewer grid steps.
    if B <= 512:
        return B
    for t in (512, 256, 128, 64, 32, 16, 8):
        if B % t == 0:
            return t
    return B


def distillation_loss_forward(inputs, outputs, labels, teacher_w, teacher_b,
                              *, distillation_type="soft", alpha=0.5, tau=1.0,
                              batch_tile=None):
    """inputs: (B, D) features fed to the (linear) teacher; outputs: Tensor or
    (class_logits, dist_logits) tuple of shape (B, C); labels: (B,) int class ids."""
    assert distillation_type in ("none", "soft", "hard")
    outputs_kd = None
    if isinstance(outputs, (tuple, list)):
        outputs, outputs_kd = outputs
    if distillation_type != "none" and outputs_kd is None:
        raise ValueError("When knowledge distillation is enabled, the model is expected "
                         "to return a Tuple[Tensor, Tensor] with the output of the "
                         "class_token and the dist_token")

    outputs = outputs.astype(jnp.float32)
    B, C = outputs.shape
    if batch_tile is None:
        batch_tile = _pick_batch_tile(B)
    assert B % batch_tile == 0
    labels2d = labels.reshape(B, 1).astype(jnp.int32)

    kernel = functools.partial(
        _distill_kernel,
        distillation_type=distillation_type,
        alpha=float(alpha), tau=float(tau),
        inv_batch=1.0 / float(B),
        soft_scale=float(alpha) * float(tau) * float(tau) / float(B * C))

    tile_bc = pl.BlockSpec((batch_tile, C), lambda i: (i, 0))
    tile_lab = pl.BlockSpec((batch_tile, 1), lambda i: (i, 0))

    if distillation_type == "none":
        # Teacher inputs / weights never touch HBM<->VMEM on this path.
        in_specs = [tile_bc, tile_lab]
        args = (outputs, labels2d)
    else:
        inputs = inputs.astype(jnp.float32)
        Bi, D = inputs.shape
        assert Bi == B
        outputs_kd = outputs_kd.astype(jnp.float32)
        tw = teacher_w.astype(jnp.float32)
        tb2d = teacher_b.reshape(1, C).astype(jnp.float32)
        in_specs = [
            pl.BlockSpec((batch_tile, D), lambda i: (i, 0)),   # teacher inputs tile
            pl.BlockSpec((D, C), lambda i: (0, 0)),            # teacher W (resident)
            pl.BlockSpec((1, C), lambda i: (0, 0)),            # teacher b (resident)
            tile_bc,                                           # student class logits
            tile_bc,                                           # student dist logits
            tile_lab,                                          # labels
        ]
        args = (inputs, tw, tb2d, outputs, outputs_kd, labels2d)

    loss = pl.pallas_call(
        kernel,
        out_shape=jax.ShapeDtypeStruct((1, 1), jnp.float32),
        grid_spec=pltpu.PrefetchScalarGridSpec(
            num_scalar_prefetch=0,
            grid=(B // batch_tile,),
            in_specs=in_specs,
            out_specs=pl.BlockSpec((1, 1), lambda i: (0, 0)),  # scalar loss accumulator
        ),
        compiler_params=pltpu.CompilerParams(
            dimension_semantics=("arbitrary",)),   # batch axis reduces into the loss
    )(*args)
    return loss[0, 0]


# --------------------------- pure-JAX reference -------------------------------

def _distillation_loss_ref(inputs, outputs, outputs_kd, labels, teacher_w, teacher_b,
                           distillation_type, alpha, tau):
    B, C = outputs.shape
    logp = jax.nn.log_softmax(outputs, axis=1)
    base = -jnp.mean(logp[jnp.arange(B), labels])
    if distillation_type == "none":
        return base
    t_logits = jnp.dot(inputs.astype(jnp.bfloat16), teacher_w.astype(jnp.bfloat16),
                       preferred_element_type=jnp.float32) + teacher_b[None, :]
    if distillation_type == "soft":
        T = tau
        log_ps = jax.nn.log_softmax(outputs_kd / T, axis=1)
        log_pt = jax.nn.log_softmax(t_logits / T, axis=1)
        dl = jnp.sum(jnp.exp(log_pt) * (log_pt - log_ps)) * (T * T) / (B * C)
    else:
        t_arg = jnp.argmax(t_logits, axis=1)
        logkd = jax.nn.log_softmax(outputs_kd, axis=1)
        dl = -jnp.mean(logkd[jnp.arange(B), t_arg])
    return base * (1.0 - alpha) + dl * alpha


if __name__ == "__main__":
    key = jax.random.PRNGKey(0)
    k = jax.random.split(key, 6)

    # small, lane-aligned shapes: classes (128) on the lane axis
    B, D, C = 16, 256, 128
    inputs = jax.random.normal(k[0], (B, D), dtype=jnp.float32)
    outputs = jax.random.normal(k[1], (B, C), dtype=jnp.float32)
    outputs_kd = jax.random.normal(k[2], (B, C), dtype=jnp.float32)
    labels = jax.random.randint(k[3], (B,), 0, C, dtype=jnp.int32)
    teacher_w = 0.05 * jax.random.normal(k[4], (D, C), dtype=jnp.float32)
    teacher_b = 0.05 * jax.random.normal(k[5], (C,), dtype=jnp.float32)

    alpha, tau = 0.5, 2.0
    for dt in ("none", "soft", "hard"):
        want = _distillation_loss_ref(inputs, outputs, outputs_kd, labels,
                                      teacher_w, teacher_b, dt, alpha, tau)
        # default tile (single grid step) and a forced 8-row tile (2 grid steps)
        for bt in (None, 8):
            fn = jax.jit(functools.partial(distillation_loss_forward,
                                           distillation_type=dt, alpha=alpha, tau=tau,
                                           batch_tile=bt))
            got = jax.block_until_ready(
                fn(inputs, (outputs, outputs_kd), labels, teacher_w, teacher_b))
            g, w = float(got), float(want)
            assert math.isfinite(g), (dt, bt, g)
            assert abs(g - w) <= 1e-4 + 1e-4 * abs(w), (dt, bt, g, w)

    print("KERNEL_OK")
</pallas_src>

<mosaic_0001>
module attributes {stable_mosaic.version = 11 : i64} {
  func.func @_distill_kernel(%arg0: i32, %arg1: memref<16x128xf32, #tpu.memory_space<vmem>>, %arg2: memref<16x1xi32, #tpu.memory_space<vmem>>, %arg3: memref<1x1xf32, #tpu.memory_space<vmem>>) attributes {dimension_semantics = [#tpu.dimension_semantics<arbitrary>], iteration_bounds = array<i64: 1>, scalar_prefetch = 0 : i64, scratch_operands = 0 : i64, tpu.core_type = #tpu.core_type<tc>, window_params = [{transform_indices = @transform_0, window_bounds = array<i64: 16, 128>}, {transform_indices = @transform_1, window_bounds = array<i64: 16, 1>}, {pipeline_mode = #tpu.pipeline_mode<synchronous>, transform_indices = @transform_2, window_bounds = array<i64: 1, 1>}]} {
    %c0_i32 = arith.constant 0 : i32
    %0 = arith.cmpi eq, %arg0, %c0_i32 : i32
    %1 = arith.extui %0 : i1 to i32
    %c0_i32_0 = arith.constant 0 : i32
    %2 = arith.cmpi ne, %1, %c0_i32_0 : i32
    scf.if %2 {
      %cst_12 = arith.constant 0.000000e+00 : f32
      %34 = vector.broadcast %cst_12 : f32 to vector<1x1xf32>
      %c0_13 = arith.constant 0 : index
      %c0_14 = arith.constant 0 : index
      %35 = vector.load %arg3[%c0_13, %c0_14] : memref<1x1xf32, #tpu.memory_space<vmem>>, vector<1x1xf32>
      tpu.vector_store %arg3[%c0_13, %c0_14], %34 {strides = array<i32>} : memref<1x1xf32, #tpu.memory_space<vmem>>, vector<1x1xf32>,
    } else {
    }
    %c0 = arith.constant 0 : index
    %c0_1 = arith.constant 0 : index
    %3 = vector.load %arg1[%c0, %c0_1] : memref<16x128xf32, #tpu.memory_space<vmem>>, vector<16x128xf32>
    %c0_2 = arith.constant 0 : index
    %c0_3 = arith.constant 0 : index
    %4 = vector.load %arg2[%c0_2, %c0_3] : memref<16x1xi32, #tpu.memory_space<vmem>>, vector<16x1xi32>
    %5 = tpu.iota {dimensions = array<i32: 1>} : vector<16x128xi32>
    %6 = vector.broadcast %4 : vector<16x1xi32> to vector<16x128xi32>
    %7 = arith.cmpi eq, %5, %6 : vector<16x128xi32>
    %8 = arith.extui %7 : vector<16x128xi1> to vector<16x128xi32>
    %9 = arith.sitofp %8 : vector<16x128xi32> to vector<16x128xf32>
    %cst = arith.constant dense<0xFF800000> : vector<16xf32>
    %10 = vector.multi_reduction <maximumf>, %3, %cst [1] : vector<16x128xf32> to vector<16xf32>
    %11 = vector.shape_cast %10 : vector<16xf32> to vector<16x1xf32>
    %12 = vector.broadcast %11 : vector<16x1xf32> to vector<16x128xf32>
    %13 = arith.subf %3, %12 : vector<16x128xf32>
    %14 = math.exp %13 : vector<16x128xf32>
    %cst_4 = arith.constant dense<0.000000e+00> : vector<16xf32>
    %15 = vector.multi_reduction <add>, %14, %cst_4 [1] : vector<16x128xf32> to vector<16xf32>
    %16 = vector.shape_cast %15 : vector<16xf32> to vector<16x1xf32>
    %17 = math.log %16 : vector<16x1xf32>
    %18 = arith.addf %11, %17 : vector<16x1xf32>
    %19 = vector.shape_cast %18 : vector<16x1xf32> to vector<1x16x1xf32>
    %cst_5 = arith.constant dense<0.000000e+00> : vector<1xf32>
    %20 = vector.multi_reduction <add>, %19, %cst_5 [1, 2] : vector<1x16x1xf32> to vector<1xf32>
    %21 = vector.shape_cast %20 : vector<1xf32> to vector<1x1x1xf32>
    %22 = vector.extract %21[0, 0, 0] : f32 from vector<1x1x1xf32>
    %23 = arith.mulf %3, %9 : vector<16x128xf32>
    %24 = vector.shape_cast %23 : vector<16x128xf32> to vector<1x16x128xf32>
    %cst_6 = arith.constant dense<0.000000e+00> : vector<1xf32>
    %25 = vector.multi_reduction <add>, %24, %cst_6 [1, 2] : vector<1x16x128xf32> to vector<1xf32>
    %26 = vector.shape_cast %25 : vector<1xf32> to vector<1x1x1xf32>
    %27 = vector.extract %26[0, 0, 0] : f32 from vector<1x1x1xf32>
    %28 = arith.subf %22, %27 : f32
    %cst_7 = arith.constant 6.250000e-02 : f32
    %29 = arith.mulf %28, %cst_7 : f32
    %c0_8 = arith.constant 0 : index
    %c0_9 = arith.constant 0 : index
    %30 = vector.load %arg3[%c0_8, %c0_9] : memref<1x1xf32, #tpu.memory_space<vmem>>, vector<1x1xf32>
    %31 = vector.broadcast %29 : f32 to vector<1x1xf32>
    %32 = arith.addf %30, %31 : vector<1x1xf32>
    %c0_10 = arith.constant 0 : index
    %c0_11 = arith.constant 0 : index
    %33 = vector.load %arg3[%c0_10, %c0_11] : memref<1x1xf32, #tpu.memory_space<vmem>>, vector<1x1xf32>
    tpu.vector_store %arg3[%c0_10, %c0_11], %32 {strides = array<i32>} : memref<1x1xf32, #tpu.memory_space<vmem>>, vector<1x1xf32>,
    return
  }
  func.func @transform_0(%arg0: i32) -> (i32, i32) {
    %c0_i32 = arith.constant 0 : i32
    %c0_i32_0 = arith.constant 0 : i32
    return %arg0, %c0_i32 : i32, i32
  }
  func.func @transform_1(%arg0: i32) -> (i32, i32) {
    %c0_i32 = arith.constant 0 : i32
    %c0_i32_0 = arith.constant 0 : i32
    return %arg0, %c0_i32 : i32, i32
  }
  func.func @transform_2(%arg0: i32) -> (i32, i32) {
    %c0_i32 = arith.constant 0 : i32
    %c0_i32_0 = arith.constant 0 : i32
    %c0_i32_1 = arith.constant 0 : i32
    return %c0_i32, %c0_i32_0 : i32, i32
  }
}

</mosaic_0001>

<llo_original>
// kernel: distillation_loss_forward.1
$region0: #{distillation_loss_forward.1}
  #allocation0 [shape = 'u32[]', space=smem, size = 0x4, offset = 0x4, fixed_abs, tag = 'smem constant byte address 0x4 - core index']
  #allocation1 [shape = 'u32[144,128]{1,0:T(1,128)}', space=vmem, size = 0x12000, scoped, tag = 'internal scratch']
  %s0 = inlined_call_operand.vmem [shape: f32[16,128], index: 0, kind: input, shape index: {}]
  %s1 = inlined_call_operand.vmem [shape: s32[16,1], index: 1, kind: input, shape index: {}]
  %s2 = inlined_call_operand.hbm [shape: f32[1,1], index: 2, kind: output, shape index: {}]
  %s3 = sld [smem:[#allocation0]]
  $region22: #{distillation_loss_forward.1} parent=0
    _
  %s5 = ssub.s32 1, %s3
  %s6 = scalar_select 0, %s5, %s3
  $region1: #{distillation_loss_forward.1} parent=0
    #allocation2 [shape = 'u8[512]{0}', space=vmem, size = 0x400, scoped, tag = 'output window, operand 0, single buffered']
    #allocation3 [shape = 's32[1]{0}', space=sflag, size = 0x4, scoped, tag = 'scoped memory for distillation_loss_forward.1']
    %7 = vsyncpa [#allocation3], 0
    // Predicated region
    $region2: #{distillation_loss_forward.1} parent=1 // pred_check
      _
    $region3: #{distillation_loss_forward.1} parent=1 // pred_check_branch
      %9 = sbr.rel (0) target = $region5
    $region4: #{distillation_loss_forward.1} parent=1 // pred_region
      _
    $region5: #{distillation_loss_forward.1} parent=1 // pred_fallthru
      _
    // Predicated region
    $region6: #{distillation_loss_forward.1} parent=1 // pred_check
      _
    $region7: #{distillation_loss_forward.1} parent=1 // pred_check_branch
      %11 = sbr.rel (0) target = $region9
    $region8: #{distillation_loss_forward.1} parent=1 // pred_region
      _
    $region9: #{distillation_loss_forward.1} parent=1 // pred_fallthru
      _
    %p12 = scmp.eq.s32.totalorder 0, 0
    // Predicated region
    $region10: #{distillation_loss_forward.1} parent=1 // pred_check
      %p13 = pneg %p12
    $region11: #{distillation_loss_forward.1} parent=1 // pred_check_branch
      %15 = sbr.rel (%p13) target = $region13
    $region12: #{distillation_loss_forward.1} parent=1 // pred_region
      %vm16 = vcmask 0
      %17 = vst.msk [vmem:[#allocation2] sm:$0x1] %vm16, 0.0
    $region13: #{distillation_loss_forward.1} parent=1 // pred_fallthru
      _
    %v18 = vld [vmem:[%s0] sm:$0xff]
    %v19 = vld [vmem:[%s0 + $0x8] sm:$0xff]
    %v20 = vld [vmem:[%s1] sm:$0xff]
    %v21 = vld [vmem:[%s1 + $0x8] sm:$0xff]
    %v22 = vlaneseq
    %v23 = vand.u32 %v22, 127
    %24 = vset.pattern.permute.xlu0 0
    %25 = vperm.xlu0 %24, %v20
    %v26 = vpop.permute.xlu0 %25
    %27 = vset.pattern.permute.xlu0 0
    %28 = vperm.xlu0 %27, %v21
    %v29 = vpop.permute.xlu0 %28
    %vm30 = vcmp.eq.s32.totalorder %v23, %v26
    %vm31 = vcmp.eq.s32.totalorder %v23, %v29
    %v32 = vsel %vm30, 1, 0
    %v33 = vsel %vm31, 1, 0
    %v34 = vcvt.s32.f32 %v32
    %v35 = vcvt.s32.f32 %v33
    %36 = vmax.xlane.f32.xlu0 %v18
    %v37 = vpop.xlane.xlu0 %36
    %38 = vmax.xlane.f32.xlu0 %v19
    %v39 = vpop.xlane.xlu0 %38
    %v40 = vsub.f32 %v18, %v37
    %v41 = vsub.f32 %v19, %v39
    %v42 = vmul.f32 %v40, 1.442695
    %v43 = vpow.pop %v42
    %v44 = vmul.f32 %v41, 1.442695
    %v45 = vpow.pop %v44
    %46 = vadd.xlane.f32.xlu0 %v43
    %v47 = vpop.xlane.xlu0 %46
    %48 = vadd.xlane.f32.xlu0 %v45
    %v49 = vpop.xlane.xlu0 %48
    %v50 = vlog2.pop %v47
    %v51 = vmul.f32 %v50, 0.6931472
    %v52 = vlog2.pop %v49
    %v53 = vmul.f32 %v52, 0.6931472
    %v54 = vadd.f32 %v37, %v51
    %v55 = vadd.f32 %v39, %v53
    %vm56 = vcmask 7168
    %v57 = vsel %vm56, %v54, 0.0
    %v58 = vsel %vm56, %v55, 0.0
    %v59 = vadd.f32 %v57, %v58
    %60 = vadd.xlane.f32.xlu0 %v59
    %v61 = vpop.xlane.xlu0 %60
    %v62 = vrot.slane %v61, 4
    %v63 = vadd.f32 %v61, %v62
    %v64 = vrot.slane %v63, 2
    %v65 = vadd.f32 %v63, %v64
    %v66 = vrot.slane %v65, 1
    %v67 = vadd.f32 %v65, %v66
    %s68 = vtos %v67
    %v69 = vmul.f32 %v18, %v34
    %v70 = vmul.f32 %v19, %v35
    %v71 = vadd.f32 %v69, %v70
    %72 = vadd.xlane.f32.xlu0 %v71
    %v73 = vpop.xlane.xlu0 %72
    %v74 = vrot.slane %v73, 4
    %v75 = vadd.f32 %v73, %v74
    %v76 = vrot.slane %v75, 2
    %v77 = vadd.f32 %v75, %v76
    %v78 = vrot.slane %v77, 1
    %v79 = vadd.f32 %v77, %v78
    %s80 = vtos %v79
    %s81 = ssub.f32 %s68, %s80
    %s82 = smul.f32 %s81, 0.0625
    %v83 = vld [vmem:[#allocation2] sm:$0x1]
    %v84 = vstv %s82
    %v85 = vadd.f32 %v83, %v84
    %vm86 = vcmask 0
    %87 = vst.msk [vmem:[#allocation2] sm:$0x1] %vm86, %v85
    // Predicated region
    $region14: #{distillation_loss_forward.1} parent=1 // pred_check
      _
    $region15: #{distillation_loss_forward.1} parent=1 // pred_check_branch
      %89 = sbr.rel (0) target = $region17
    $region16: #{distillation_loss_forward.1} parent=1 // pred_region
      %s91 = ssub.s32 16, 16
      %92 = vsyncadd [#allocation3], %s91
      %s94 = sshll.u32 [#allocation2], 4
      %s95 = int_to_ptr.vmem [resolvable:$true] %s94
      %97 = dma.vmem_to_hbm [thread:$0]  %s95, 16, %s2, [#allocation3]
    $region17: #{distillation_loss_forward.1} parent=1 // pred_fallthru
      _
    // Predicated region
    $region18: #{distillation_loss_forward.1} parent=1 // pred_check
      _
    $region19: #{distillation_loss_forward.1} parent=1 // pred_check_branch
      %99 = sbr.rel (0) target = $region21
    $region20: #{distillation_loss_forward.1} parent=1 // pred_region
      %100 = dma.done [#allocation3], 16
    $region21: #{distillation_loss_forward.1} parent=1 // pred_fallthru
      _
    %101 = vsyncpa [#allocation3], 1

</llo_original>
